<compile_context>
chip_gen: v6e
topology: v6e:2x2x1
jax: 0.10.0
libtpu: 0.0.40
codegen_flags: <defaults>
</compile_context>

<pallas_src>
import functools

import jax
import jax.numpy as jnp
from jax.experimental import pallas as pl
from jax.experimental.pallas import tpu as pltpu

C_IN = 4
HIDDEN = 32
C_OUT = 3            # (lower_edge, prediction, upper_edge) head
KSIZE = 3
STACK = KSIZE * KSIZE * C_IN          # 36 — contraction dim of the fused conv dot
_ROW_TILE_LANES = 8192                # target flattened tile width (lanes) per step


# ---------------------------------------------------------------------------
# Pallas kernel: build stacked window -> ONE K=36 bf16 dot -> +b1 -> ReLU
#                -> bf16 1x1 head dot -> +b2
# One row-tile of one image per grid step, channels-first / lane-dense.
# ---------------------------------------------------------------------------
def _conv_head_kernel(x_ref, w1_ref, b1_ref, w2_ref, b2_ref, o_ref, stack_ref,
                      *, w_pad):
    # x_ref    : (C_IN, S_in_tile)    bf16  flattened (R+2, Wp) slab (+2 tail zeros)
    # w1_ref   : (HIDDEN, STACK)      bf16  3x3 taps, column = (dh*3+dw)*C_IN + c
    # b1_ref   : (HIDDEN, 1)          f32
    # w2_ref   : (C_OUT, HIDDEN)      bf16  1x1 conv
    # b2_ref   : (C_OUT, 1)           f32
    # o_ref    : (C_OUT, S_out_tile)  f32   S_out_tile = R*Wp (junk cols cropped later)
    # stack_ref: (STACK, S_out_tile)  bf16  VMEM scratch — stacked shifted windows
    s_out = o_ref.shape[-1]

    # Stack the 9 shifted windows once (static slices only).
    for dh in range(KSIZE):
        for dw in range(KSIZE):
            tap = dh * KSIZE + dw
            shift = dh * w_pad + dw                       # static Python int
            stack_ref[tap * C_IN:(tap + 1) * C_IN, :] = x_ref[:, shift:shift + s_out]

    # Single fused 3x3-conv contraction: (HIDDEN, 36) x (36, S) -> f32.
    acc = jnp.dot(w1_ref[...], stack_ref[...],
                  preferred_element_type=jnp.float32)

    # f32 epilogue (safe on v5e: no bf16 VPU needed).
    h = jnp.maximum(acc + b1_ref[...], 0.0)               # (HIDDEN, S) f32

    # bf16 1x1 head with f32 accumulation.
    out = jnp.dot(w2_ref[...], h.astype(jnp.bfloat16),
                  preferred_element_type=jnp.float32) + b2_ref[...]
    o_ref[...] = out.astype(o_ref.dtype)                  # (C_OUT, S) lane-dense store


# ---------------------------------------------------------------------------
# ModelWithUncertainty forward (JAX/Pallas); output NCHW (N, C_OUT, H, W)
# ---------------------------------------------------------------------------
def model_with_uncertainty_forward(x_nchw, params, *, row_tile=None):
    N, C, H, W = x_nchw.shape
    assert C == C_IN
    Wp = W + 2

    # Row-tile size: bounds per-step VMEM (~a few MB) on v5e/v6e/v7x alike.
    if row_tile is None:
        row_tile = min(H, max(1, _ROW_TILE_LANES // Wp))
    R = row_tile
    T = -(-H // R)                     # number of row tiles
    H_pad = T * R
    S_out_tile = R * Wp
    S_in_tile = (R + 2) * Wp + 2       # +2 so the (dh,dw)=(2,2) shift stays in bounds

    # Zero-pad (conv pad=1 plus bottom rows so the last tile is full), then build
    # overlapping row tiles (tile r covers padded rows [r*R, r*R + R + 2)) — the
    # 2-row halo is duplicated here so all in-kernel slices are static.
    x_pad = jnp.pad(x_nchw, ((0, 0), (0, 0), (1, 1 + H_pad - H), (1, 1)))
    rows = (jnp.arange(T) * R)[:, None] + jnp.arange(R + 2)[None, :]   # (T, R+2)
    x_tiles = x_pad[:, :, rows, :]                        # (N, C_IN, T, R+2, Wp)
    x_tiles = x_tiles.transpose(0, 2, 1, 3, 4)            # (N, T, C_IN, R+2, Wp)
    x_tiles = x_tiles.reshape(N, T, C_IN, (R + 2) * Wp)
    x_tiles = jnp.pad(x_tiles, ((0, 0), (0, 0), (0, 0), (0, 2)))
    x_tiles = x_tiles.astype(jnp.bfloat16)                # f32 MXU accumulation in-kernel

    kernel = functools.partial(_conv_head_kernel, w_pad=Wp)

    flops = 2 * N * T * S_out_tile * (STACK * HIDDEN + HIDDEN * C_OUT)
    bytes_accessed = (N * T * C_IN * S_in_tile * 2            # bf16 input tiles
                      + (HIDDEN * STACK + C_OUT * HIDDEN) * 2  # bf16 weights
                      + (HIDDEN + C_OUT) * 4                   # f32 biases
                      + N * T * C_OUT * S_out_tile * 4)        # f32 output

    out_tiles = pl.pallas_call(
        kernel,
        out_shape=jax.ShapeDtypeStruct((N, T, C_OUT, S_out_tile), jnp.float32),
        grid_spec=pltpu.PrefetchScalarGridSpec(
            num_scalar_prefetch=0,
            grid=(N, T),
            in_specs=[
                pl.BlockSpec((None, None, C_IN, S_in_tile), lambda n, t: (n, t, 0, 0)),
                pl.BlockSpec((HIDDEN, STACK), lambda n, t: (0, 0)),
                pl.BlockSpec((HIDDEN, 1), lambda n, t: (0, 0)),
                pl.BlockSpec((C_OUT, HIDDEN), lambda n, t: (0, 0)),
                pl.BlockSpec((C_OUT, 1), lambda n, t: (0, 0)),
            ],
            out_specs=pl.BlockSpec((None, None, C_OUT, S_out_tile),
                                   lambda n, t: (n, t, 0, 0)),
            scratch_shapes=[pltpu.VMEM((STACK, S_out_tile), jnp.bfloat16)],
        ),
        compiler_params=pltpu.CompilerParams(
            dimension_semantics=("parallel", "parallel"),
            vmem_limit_bytes=32 * 1024 * 1024),
        cost_estimate=pl.CostEstimate(
            flops=flops, transcendentals=0, bytes_accessed=bytes_accessed),
    )(x_tiles, params["w1_stack"], params["b1"], params["w2"], params["b2"])

    # (N, T, C_OUT, R*Wp) -> (N, C_OUT, H_pad, Wp) -> crop junk cols/rows -> NCHW.
    out = out_tiles.reshape(N, T, C_OUT, R, Wp)
    out = out.transpose(0, 2, 1, 3, 4).reshape(N, C_OUT, H_pad, Wp)
    return out[:, :, :H, :W]


# ---------------------------------------------------------------------------
# Parameters (PyTorch conv layouts -> kernel layouts)
# ---------------------------------------------------------------------------
def init_params(key):
    k1, k2, k3, k4 = jax.random.split(key, 4)
    w1_t = jax.random.normal(k1, (HIDDEN, C_IN, KSIZE, KSIZE), jnp.float32) * 0.05
    b1 = jax.random.normal(k2, (HIDDEN,), jnp.float32) * 0.01
    w2_t = jax.random.normal(k3, (C_OUT, HIDDEN, 1, 1), jnp.float32) * 0.05
    b2 = jax.random.normal(k4, (C_OUT,), jnp.float32) * 0.01

    # (HIDDEN, C_IN, 3, 3) -> stacked (HIDDEN, 9*C_IN), column = (dh*3+dw)*C_IN + c.
    w1_stack = w1_t.transpose(0, 2, 3, 1).reshape(HIDDEN, STACK)
    return {
        "w1_stack": w1_stack.astype(jnp.bfloat16),
        "b1": b1.reshape(HIDDEN, 1),
        "w2": w2_t.reshape(C_OUT, HIDDEN).astype(jnp.bfloat16),
        "b2": b2.reshape(C_OUT, 1),
    }


# ---------------------------------------------------------------------------
# Pure-JAX reference (same bf16-rounded operands, f32 accumulation)
# ---------------------------------------------------------------------------
def reference_forward(x_nchw, params):
    N, C, H, W = x_nchw.shape
    xb = x_nchw.astype(jnp.bfloat16).astype(jnp.float32)
    w1 = params["w1_stack"].astype(jnp.float32).reshape(HIDDEN, KSIZE, KSIZE, C_IN)
    xp = jnp.pad(xb, ((0, 0), (0, 0), (1, 1), (1, 1)))
    h = jnp.zeros((N, HIDDEN, H, W), jnp.float32)
    for dh in range(KSIZE):
        for dw in range(KSIZE):
            win = xp[:, :, dh:dh + H, dw:dw + W]          # (N, C_IN, H, W)
            h = h + jnp.einsum('fc,nchw->nfhw', w1[:, dh, dw, :], win)
    h = jnp.maximum(h + params["b1"].reshape(1, HIDDEN, 1, 1), 0.0)
    hb = h.astype(jnp.bfloat16).astype(jnp.float32)       # bf16 head, like the kernel
    w2 = params["w2"].astype(jnp.float32)
    out = (jnp.einsum('of,nfhw->nohw', w2, hb)
           + params["b2"].reshape(1, C_OUT, 1, 1))
    return out


# TODO(synk): loss_fn / nested_sets_from_output / nested_sets depend on injected
# callables (in_train_loss_fn, in_nested_sets_from_output_fn) and the calibrated
# lhat buffer, none of which are defined by the module; only forward() is a kernel.

if __name__ == "__main__":
    key = jax.random.PRNGKey(0)
    kx, kp = jax.random.split(key)
    x = jax.random.normal(kx, (2, C_IN, 16, 16), jnp.float32)   # NCHW
    params = init_params(kp)

    forward = jax.jit(model_with_uncertainty_forward)
    out = jax.block_until_ready(forward(x, params))

    ref = reference_forward(x, params)
    assert out.shape == (2, C_OUT, 16, 16)
    err = float(jnp.max(jnp.abs(out - ref)))
    assert jnp.allclose(out, ref, atol=1e-3, rtol=1e-3), err
    print("KERNEL_OK")
</pallas_src>

<mosaic_0001>
module attributes {stable_mosaic.version = 11 : i64} {
  func.func @_conv_head_kernel(%arg0: i32, %arg1: i32, %arg2: memref<1x1x4x326xbf16, #tpu.memory_space<vmem>>, %arg3: memref<32x36xbf16, #tpu.memory_space<vmem>>, %arg4: memref<32x1xf32, #tpu.memory_space<vmem>>, %arg5: memref<3x32xbf16, #tpu.memory_space<vmem>>, %arg6: memref<3x1xf32, #tpu.memory_space<vmem>>, %arg7: memref<1x1x3x288xf32, #tpu.memory_space<vmem>>, %arg8: memref<36x288xbf16, #tpu.memory_space<vmem>>) attributes {dimension_semantics = [#tpu.dimension_semantics<parallel>, #tpu.dimension_semantics<parallel>], iteration_bounds = array<i64: 2, 1>, scalar_prefetch = 0 : i64, scratch_operands = 1 : i64, tpu.core_type = #tpu.core_type<tc>, window_params = [{transform_indices = @transform_0, window_bounds = array<i64: 1, 1, 4, 326>}, {pipeline_mode = #tpu.pipeline_mode<synchronous>, transform_indices = @transform_1, window_bounds = array<i64: 32, 36>}, {pipeline_mode = #tpu.pipeline_mode<synchronous>, transform_indices = @transform_2, window_bounds = array<i64: 32, 1>}, {pipeline_mode = #tpu.pipeline_mode<synchronous>, transform_indices = @transform_3, window_bounds = array<i64: 3, 32>}, {pipeline_mode = #tpu.pipeline_mode<synchronous>, transform_indices = @transform_4, window_bounds = array<i64: 3, 1>}, {transform_indices = @transform_5, window_bounds = array<i64: 1, 1, 3, 288>}]} {
    %c0 = arith.constant 0 : index
    %c0_0 = arith.constant 0 : index
    %c0_1 = arith.constant 0 : index
    %c0_2 = arith.constant 0 : index
    %0 = vector.load %arg2[%c0, %c0_0, %c0_1, %c0_2] : memref<1x1x4x326xbf16, #tpu.memory_space<vmem>>, vector<1x1x4x288xbf16>
    %1 = vector.shape_cast %0 : vector<1x1x4x288xbf16> to vector<4x288xbf16>
    %c0_3 = arith.constant 0 : index
    %c0_4 = arith.constant 0 : index
    %2 = vector.load %arg8[%c0_3, %c0_4] : memref<36x288xbf16, #tpu.memory_space<vmem>>, vector<4x288xbf16>
    tpu.vector_store %arg8[%c0_3, %c0_4], %1 {strides = array<i32>} : memref<36x288xbf16, #tpu.memory_space<vmem>>, vector<4x288xbf16>,
    %c0_5 = arith.constant 0 : index
    %c0_6 = arith.constant 0 : index
    %c0_7 = arith.constant 0 : index
    %c1 = arith.constant 1 : index
    %3 = vector.load %arg2[%c0_5, %c0_6, %c0_7, %c1] : memref<1x1x4x326xbf16, #tpu.memory_space<vmem>>, vector<1x1x4x288xbf16>
    %4 = vector.shape_cast %3 : vector<1x1x4x288xbf16> to vector<4x288xbf16>
    %c4 = arith.constant 4 : index
    %c0_8 = arith.constant 0 : index
    %5 = vector.load %arg8[%c4, %c0_8] : memref<36x288xbf16, #tpu.memory_space<vmem>>, vector<4x288xbf16>
    tpu.vector_store %arg8[%c4, %c0_8], %4 {strides = array<i32>} : memref<36x288xbf16, #tpu.memory_space<vmem>>, vector<4x288xbf16>,
    %c0_9 = arith.constant 0 : index
    %c0_10 = arith.constant 0 : index
    %c0_11 = arith.constant 0 : index
    %c2 = arith.constant 2 : index
    %6 = vector.load %arg2[%c0_9, %c0_10, %c0_11, %c2] : memref<1x1x4x326xbf16, #tpu.memory_space<vmem>>, vector<1x1x4x288xbf16>
    %7 = vector.shape_cast %6 : vector<1x1x4x288xbf16> to vector<4x288xbf16>
    %c8 = arith.constant 8 : index
    %c0_12 = arith.constant 0 : index
    %8 = vector.load %arg8[%c8, %c0_12] : memref<36x288xbf16, #tpu.memory_space<vmem>>, vector<4x288xbf16>
    tpu.vector_store %arg8[%c8, %c0_12], %7 {strides = array<i32>} : memref<36x288xbf16, #tpu.memory_space<vmem>>, vector<4x288xbf16>,
    %c0_13 = arith.constant 0 : index
    %c0_14 = arith.constant 0 : index
    %c0_15 = arith.constant 0 : index
    %c18 = arith.constant 18 : index
    %9 = vector.load %arg2[%c0_13, %c0_14, %c0_15, %c18] : memref<1x1x4x326xbf16, #tpu.memory_space<vmem>>, vector<1x1x4x288xbf16>
    %10 = vector.shape_cast %9 : vector<1x1x4x288xbf16> to vector<4x288xbf16>
    %c12 = arith.constant 12 : index
    %c0_16 = arith.constant 0 : index
    %11 = vector.load %arg8[%c12, %c0_16] : memref<36x288xbf16, #tpu.memory_space<vmem>>, vector<4x288xbf16>
    tpu.vector_store %arg8[%c12, %c0_16], %10 {strides = array<i32>} : memref<36x288xbf16, #tpu.memory_space<vmem>>, vector<4x288xbf16>,
    %c0_17 = arith.constant 0 : index
    %c0_18 = arith.constant 0 : index
    %c0_19 = arith.constant 0 : index
    %c19 = arith.constant 19 : index
    %12 = vector.load %arg2[%c0_17, %c0_18, %c0_19, %c19] : memref<1x1x4x326xbf16, #tpu.memory_space<vmem>>, vector<1x1x4x288xbf16>
    %13 = vector.shape_cast %12 : vector<1x1x4x288xbf16> to vector<4x288xbf16>
    %c16 = arith.constant 16 : index
    %c0_20 = arith.constant 0 : index
    %14 = vector.load %arg8[%c16, %c0_20] : memref<36x288xbf16, #tpu.memory_space<vmem>>, vector<4x288xbf16>
    tpu.vector_store %arg8[%c16, %c0_20], %13 {strides = array<i32>} : memref<36x288xbf16, #tpu.memory_space<vmem>>, vector<4x288xbf16>,
    %c0_21 = arith.constant 0 : index
    %c0_22 = arith.constant 0 : index
    %c0_23 = arith.constant 0 : index
    %c20 = arith.constant 20 : index
    %15 = vector.load %arg2[%c0_21, %c0_22, %c0_23, %c20] : memref<1x1x4x326xbf16, #tpu.memory_space<vmem>>, vector<1x1x4x288xbf16>
    %16 = vector.shape_cast %15 : vector<1x1x4x288xbf16> to vector<4x288xbf16>
    %c20_24 = arith.constant 20 : index
    %c0_25 = arith.constant 0 : index
    %17 = vector.load %arg8[%c20_24, %c0_25] : memref<36x288xbf16, #tpu.memory_space<vmem>>, vector<4x288xbf16>
    tpu.vector_store %arg8[%c20_24, %c0_25], %16 {strides = array<i32>} : memref<36x288xbf16, #tpu.memory_space<vmem>>, vector<4x288xbf16>,
    %c0_26 = arith.constant 0 : index
    %c0_27 = arith.constant 0 : index
    %c0_28 = arith.constant 0 : index
    %c36 = arith.constant 36 : index
    %18 = vector.load %arg2[%c0_26, %c0_27, %c0_28, %c36] : memref<1x1x4x326xbf16, #tpu.memory_space<vmem>>, vector<1x1x4x288xbf16>
    %19 = vector.shape_cast %18 : vector<1x1x4x288xbf16> to vector<4x288xbf16>
    %c24 = arith.constant 24 : index
    %c0_29 = arith.constant 0 : index
    %20 = vector.load %arg8[%c24, %c0_29] : memref<36x288xbf16, #tpu.memory_space<vmem>>, vector<4x288xbf16>
    tpu.vector_store %arg8[%c24, %c0_29], %19 {strides = array<i32>} : memref<36x288xbf16, #tpu.memory_space<vmem>>, vector<4x288xbf16>,
    %c0_30 = arith.constant 0 : index
    %c0_31 = arith.constant 0 : index
    %c0_32 = arith.constant 0 : index
    %c37 = arith.constant 37 : index
    %21 = vector.load %arg2[%c0_30, %c0_31, %c0_32, %c37] : memref<1x1x4x326xbf16, #tpu.memory_space<vmem>>, vector<1x1x4x288xbf16>
    %22 = vector.shape_cast %21 : vector<1x1x4x288xbf16> to vector<4x288xbf16>
    %c28 = arith.constant 28 : index
    %c0_33 = arith.constant 0 : index
    %23 = vector.load %arg8[%c28, %c0_33] : memref<36x288xbf16, #tpu.memory_space<vmem>>, vector<4x288xbf16>
    tpu.vector_store %arg8[%c28, %c0_33], %22 {strides = array<i32>} : memref<36x288xbf16, #tpu.memory_space<vmem>>, vector<4x288xbf16>,
    %c0_34 = arith.constant 0 : index
    %c0_35 = arith.constant 0 : index
    %c0_36 = arith.constant 0 : index
    %c38 = arith.constant 38 : index
    %24 = vector.load %arg2[%c0_34, %c0_35, %c0_36, %c38] : memref<1x1x4x326xbf16, #tpu.memory_space<vmem>>, vector<1x1x4x288xbf16>
    %25 = vector.shape_cast %24 : vector<1x1x4x288xbf16> to vector<4x288xbf16>
    %c32 = arith.constant 32 : index
    %c0_37 = arith.constant 0 : index
    %26 = vector.load %arg8[%c32, %c0_37] : memref<36x288xbf16, #tpu.memory_space<vmem>>, vector<4x288xbf16>
    tpu.vector_store %arg8[%c32, %c0_37], %25 {strides = array<i32>} : memref<36x288xbf16, #tpu.memory_space<vmem>>, vector<4x288xbf16>,
    %c0_38 = arith.constant 0 : index
    %c0_39 = arith.constant 0 : index
    %27 = vector.load %arg3[%c0_38, %c0_39] : memref<32x36xbf16, #tpu.memory_space<vmem>>, vector<32x36xbf16>
    %c0_40 = arith.constant 0 : index
    %c0_41 = arith.constant 0 : index
    %28 = vector.load %arg8[%c0_40, %c0_41] : memref<36x288xbf16, #tpu.memory_space<vmem>>, vector<36x288xbf16>
    %cst = arith.constant dense<0.000000e+00> : vector<32x288xf32>
    %29 = tpu.matmul %27, %28, %cst {dimension_numbers = #tpu.dot_dimension_numbers<[1], [0], [0], [1], [0, 0, 1, 1], [], []>} : vector<32x36xbf16>, vector<36x288xbf16>, vector<32x288xf32> -> vector<32x288xf32>
    %c0_42 = arith.constant 0 : index
    %c0_43 = arith.constant 0 : index
    %30 = vector.load %arg4[%c0_42, %c0_43] : memref<32x1xf32, #tpu.memory_space<vmem>>, vector<32x1xf32>
    %31 = vector.broadcast %30 : vector<32x1xf32> to vector<32x288xf32>
    %32 = arith.addf %29, %31 : vector<32x288xf32>
    %cst_44 = arith.constant 0.000000e+00 : f32
    %33 = vector.broadcast %cst_44 : f32 to vector<32x288xf32>
    %34 = arith.maximumf %32, %33 : vector<32x288xf32>
    %c0_45 = arith.constant 0 : index
    %c0_46 = arith.constant 0 : index
    %35 = vector.load %arg5[%c0_45, %c0_46] : memref<3x32xbf16, #tpu.memory_space<vmem>>, vector<3x32xbf16>
    %36 = arith.truncf %34 : vector<32x288xf32> to vector<32x288xbf16>
    %cst_47 = arith.constant dense<0.000000e+00> : vector<3x288xf32>
    %37 = tpu.matmul %35, %36, %cst_47 {dimension_numbers = #tpu.dot_dimension_numbers<[1], [0], [0], [1], [0, 0, 1, 1], [], []>} : vector<3x32xbf16>, vector<32x288xbf16>, vector<3x288xf32> -> vector<3x288xf32>
    %c0_48 = arith.constant 0 : index
    %c0_49 = arith.constant 0 : index
    %38 = vector.load %arg6[%c0_48, %c0_49] : memref<3x1xf32, #tpu.memory_space<vmem>>, vector<3x1xf32>
    %39 = vector.broadcast %38 : vector<3x1xf32> to vector<3x288xf32>
    %40 = arith.addf %37, %39 : vector<3x288xf32>
    %c0_50 = arith.constant 0 : index
    %c0_51 = arith.constant 0 : index
    %c0_52 = arith.constant 0 : index
    %c0_53 = arith.constant 0 : index
    %41 = vector.load %arg7[%c0_50, %c0_51, %c0_52, %c0_53] : memref<1x1x3x288xf32, #tpu.memory_space<vmem>>, vector<1x1x3x288xf32>
    %42 = vector.shape_cast %41 : vector<1x1x3x288xf32> to vector<3x288xf32>
    %43 = vector.shape_cast %40 : vector<3x288xf32> to vector<1x1x3x288xf32>
    tpu.vector_store %arg7[%c0_50, %c0_51, %c0_52, %c0_53], %43 {strides = array<i32>} : memref<1x1x3x288xf32, #tpu.memory_space<vmem>>, vector<1x1x3x288xf32>,
    return
  }
  func.func @transform_0(%arg0: i32, %arg1: i32) -> (i32, i32, i32, i32) {
    %c0_i32 = arith.constant 0 : i32
    %c0_i32_0 = arith.constant 0 : i32
    %c0_i32_1 = arith.constant 0 : i32
    return %arg0, %arg1, %c0_i32, %c0_i32_0 : i32, i32, i32, i32
  }
  func.func @transform_1(%arg0: i32, %arg1: i32) -> (i32, i32) {
    %c0_i32 = arith.constant 0 : i32
    %c0_i32_0 = arith.constant 0 : i32
    %c0_i32_1 = arith.constant 0 : i32
    return %c0_i32, %c0_i32_0 : i32, i32
  }
  func.func @transform_2(%arg0: i32, %arg1: i32) -> (i32, i32) {
    %c0_i32 = arith.constant 0 : i32
    %c0_i32_0 = arith.constant 0 : i32
    %c0_i32_1 = arith.constant 0 : i32
    return %c0_i32, %c0_i32_0 : i32, i32
  }
  func.func @transform_3(%arg0: i32, %arg1: i32) -> (i32, i32) {
    %c0_i32 = arith.constant 0 : i32
    %c0_i32_0 = arith.constant 0 : i32
    %c0_i32_1 = arith.constant 0 : i32
    return %c0_i32, %c0_i32_0 : i32, i32
  }
  func.func @transform_4(%arg0: i32, %arg1: i32) -> (i32, i32) {
    %c0_i32 = arith.constant 0 : i32
    %c0_i32_0 = arith.constant 0 : i32
    %c0_i32_1 = arith.constant 0 : i32
    return %c0_i32, %c0_i32_0 : i32, i32
  }
  func.func @transform_5(%arg0: i32, %arg1: i32) -> (i32, i32, i32, i32) {
    %c0_i32 = arith.constant 0 : i32
    %c0_i32_0 = arith.constant 0 : i32
    %c0_i32_1 = arith.constant 0 : i32
    return %arg0, %arg1, %c0_i32, %c0_i32_0 : i32, i32, i32, i32
  }
}

</mosaic_0001>

<llo_original>
// kernel: model_with_uncertainty_forward.1
$region0: #{model_with_uncertainty_forward.1}
  #allocation0 [shape = 'u32[]', space=smem, size = 0x4, offset = 0x4, fixed_abs, tag = 'smem constant byte address 0x4 - core index']
  #allocation1 [shape = 'u32[144,128]{1,0:T(1,128)}', space=vmem, size = 0x12000, scoped, tag = 'internal scratch']
  #allocation2 [shape = 'bf16[36,288]{1,0:T(8,128)(2,1)}', space=vmem, size = 0x7800, scoped, tag = 'scratch operand']
  %s0 = inlined_call_operand.vmem [shape: bf16[2,1,4,326], index: 0, kind: input, shape index: {}]
  %s1 = inlined_call_operand.vmem [shape: bf16[32,36], index: 1, kind: input, shape index: {}]
  %s2 = inlined_call_operand.vmem [shape: f32[32,1], index: 2, kind: input, shape index: {}]
  %s3 = inlined_call_operand.vmem [shape: bf16[3,32], index: 3, kind: input, shape index: {}]
  %s4 = inlined_call_operand.vmem [shape: f32[3,1], index: 4, kind: input, shape index: {}]
  %s5 = inlined_call_operand.vmem [shape: f32[2,1,3,288], index: 5, kind: output, shape index: {}]
  %s6 = sld [smem:[#allocation0]]
  $region53: #{model_with_uncertainty_forward.1} parent=0
    _
  %s8 = ssub.s32 1, %s6
  %s9 = scalar_select 0, %s8, %s6
  loop: start=0, step=1, limit=4
  $region2: #{model_with_uncertainty_forward.1} parent=0 // loop_pre_header
    _
  $region3: #{model_with_uncertainty_forward.1} parent=0 // loop_header
    %s11 = sphi 0, %s15
    %p12 = scmp.ge.s32.totalorder %s11, 4
    %s18 = sphi 0, %s30
    %s19 = sphi 0, %s26
    %s20 = sphi 0, %s18
    %s21 = sphi 0, %s19
    %s22 = sphi 0, %s20
    %s23 = sphi 0, %s21
    %s35 = sphi 0, %s37
    %s38 = sphi 0, %s35
    %s39 = sphi 0, %s38
    %s55 = sphi 0, %s39
    %s59 = sphi 0, %s59
    %s61 = sphi 0, %s59
    %s62 = sphi 0, %s61
    %s76 = sphi 0, %s62
    %s80 = sphi 0, %s80
    %s82 = sphi 0, %s80
    %s83 = sphi 0, %s82
    %s97 = sphi 0, %s83
    %s101 = sphi 0, %s101
    %s103 = sphi 0, %s101
    %s104 = sphi 0, %s103
    %s118 = sphi 0, %s104
    %s122 = sphi 0, %s122
    %s124 = sphi 0, %s122
    %s125 = sphi 0, %s124
    %s139 = sphi 0, %s125
    %s147 = sphi 0, %s149
    %s150 = sphi 0, %s147
    %s151 = sphi 0, %s150
    %s167 = sphi 0, %s151
  $region4: #{model_with_uncertainty_forward.1} parent=0 // loop_header_branch
    %14 = sbr.rel (%p12) target = $region8
  $region5: #{model_with_uncertainty_forward.1} parent=0 // loop_body
    %s16 = ssub.s32 %s11, 1
    %s17 = ssub.s32 %s11, 2
    %s24 = sadd.s32 1, %s19
    %p25 = scmp.ge.s32.totalorder %s24, 1
    %s26 = scalar_select %p25, 0, %s24
    %s27 = sadd.s32 1, %s18
    %s28 = scalar_select %p25, %s27, %s18
    %p29 = scmp.ge.s32.totalorder %s28, 2
    %s30 = scalar_select %p29, 0, %s28
    %s31 = ssub.s32 %s18, %s30
    %s32 = ssub.s32 %s19, %s26
    %s33 = sor.u32 %s31, %s32
    %p34 = scmp.eq.s32.totalorder %s33, 0
    %s36 = sadd.s32 %s35, 1
    %s37 = scalar_select %p34, %s35, %s36
    %p40 = pneg %p34
    %p41 = scmp.eq.s32.totalorder %s11, 1
    %p42 = por %p40, %p41
    %p43 = scmp.ne.s32.totalorder %s35, %s38
    %p44 = scmp.eq.s32.totalorder %s11, 0
    %p45 = por %p43, %p44
    %p46 = scmp.ne.s32.totalorder %s35, %s38
    %p47 = scmp.eq.s32.totalorder %s16, 1
    %p48 = por %p46, %p47
    %p49 = scmp.ne.s32.totalorder %s38, %s39
    %p50 = scmp.eq.s32.totalorder %s16, 0
    %p51 = por %p49, %p50
    %p52 = scmp.ne.s32.totalorder %s38, %s39
    %p53 = scmp.eq.s32.totalorder %s17, 1
    %p54 = por %p52, %p53
    %p56 = scmp.ne.s32.totalorder %s39, %s55
    %p57 = scmp.eq.s32.totalorder %s17, 0
    %p58 = por %p56, %p57
    %s60 = sadd.s32 %s59, 1
    %p63 = scmp.eq.s32.totalorder %s11, 1
    %p64 = scmp.ne.s32.totalorder %s59, %s61
    %p65 = scmp.eq.s32.totalorder %s11, 0
    %p66 = por %p64, %p65
    %p67 = scmp.ne.s32.totalorder %s59, %s61
    %p68 = scmp.eq.s32.totalorder %s16, 1
    %p69 = por %p67, %p68
    %p70 = scmp.ne.s32.totalorder %s61, %s62
    %p71 = scmp.eq.s32.totalorder %s16, 0
    %p72 = por %p70, %p71
    %p73 = scmp.ne.s32.totalorder %s61, %s62
    %p74 = scmp.eq.s32.totalorder %s17, 1
    %p75 = por %p73, %p74
    %p77 = scmp.ne.s32.totalorder %s62, %s76
    %p78 = scmp.eq.s32.totalorder %s17, 0
    %p79 = por %p77, %p78
    %s81 = sadd.s32 %s80, 1
    %p84 = scmp.eq.s32.totalorder %s11, 1
    %p85 = scmp.ne.s32.totalorder %s80, %s82
    %p86 = scmp.eq.s32.totalorder %s11, 0
    %p87 = por %p85, %p86
    %p88 = scmp.ne.s32.totalorder %s80, %s82
    %p89 = scmp.eq.s32.totalorder %s16, 1
    %p90 = por %p88, %p89
    %p91 = scmp.ne.s32.totalorder %s82, %s83
    %p92 = scmp.eq.s32.totalorder %s16, 0
    %p93 = por %p91, %p92
    %p94 = scmp.ne.s32.totalorder %s82, %s83
    %p95 = scmp.eq.s32.totalorder %s17, 1
    %p96 = por %p94, %p95
    %p98 = scmp.ne.s32.totalorder %s83, %s97
    %p99 = scmp.eq.s32.totalorder %s17, 0
    %p100 = por %p98, %p99
    %s102 = sadd.s32 %s101, 1
    %p105 = scmp.eq.s32.totalorder %s11, 1
    %p106 = scmp.ne.s32.totalorder %s101, %s103
    %p107 = scmp.eq.s32.totalorder %s11, 0
    %p108 = por %p106, %p107
    %p109 = scmp.ne.s32.totalorder %s101, %s103
    %p110 = scmp.eq.s32.totalorder %s16, 1
    %p111 = por %p109, %p110
    %p112 = scmp.ne.s32.totalorder %s103, %s104
    %p113 = scmp.eq.s32.totalorder %s16, 0
    %p114 = por %p112, %p113
    %p115 = scmp.ne.s32.totalorder %s103, %s104
    %p116 = scmp.eq.s32.totalorder %s17, 1
    %p117 = por %p115, %p116
    %p119 = scmp.ne.s32.totalorder %s104, %s118
    %p120 = scmp.eq.s32.totalorder %s17, 0
    %p121 = por %p119, %p120
    %s123 = sadd.s32 %s122, 1
    %p126 = scmp.eq.s32.totalorder %s11, 1
    %p127 = scmp.ne.s32.totalorder %s122, %s124
    %p128 = scmp.eq.s32.totalorder %s11, 0
    %p129 = por %p127, %p128
    %p130 = scmp.ne.s32.totalorder %s122, %s124
    %p131 = scmp.eq.s32.totalorder %s16, 1
    %p132 = por %p130, %p131
    %p133 = scmp.ne.s32.totalorder %s124, %s125
    %p134 = scmp.eq.s32.totalorder %s16, 0
    %p135 = por %p133, %p134
    %p136 = scmp.ne.s32.totalorder %s124, %s125
    %p137 = scmp.eq.s32.totalorder %s17, 1
    %p138 = por %p136, %p137
    %p140 = scmp.ne.s32.totalorder %s125, %s139
    %p141 = scmp.eq.s32.totalorder %s17, 0
    %p142 = por %p140, %p141
    %s143 = ssub.s32 %s18, %s30
    %s144 = ssub.s32 %s19, %s26
    %s145 = sor.u32 %s143, %s144
    %p146 = scmp.eq.s32.totalorder %s145, 0
    %s148 = sadd.s32 %s147, 1
    %s149 = scalar_select %p146, %s147, %s148
    %p152 = pneg %p146
    %p153 = scmp.eq.s32.totalorder %s11, 1
    %p154 = por %p152, %p153
    %p155 = scmp.ne.s32.totalorder %s147, %s150
    %p156 = scmp.eq.s32.totalorder %s11, 0
    %p157 = por %p155, %p156
    %p158 = scmp.ne.s32.totalorder %s147, %s150
    %p159 = scmp.eq.s32.totalorder %s16, 1
    %p160 = por %p158, %p159
    %p161 = scmp.ne.s32.totalorder %s150, %s151
    %p162 = scmp.eq.s32.totalorder %s16, 0
    %p163 = por %p161, %p162
    %p164 = scmp.ne.s32.totalorder %s150, %s151
    %p165 = scmp.eq.s32.totalorder %s17, 1
    %p166 = por %p164, %p165
    %p168 = scmp.ne.s32.totalorder %s151, %s167
    %p169 = scmp.eq.s32.totalorder %s17, 0
    %p170 = por %p168, %p169
    %p171 = scmp.le.s32.totalorder 1, %s11
    %p172 = scmp.lt.s32.totalorder %s11, 3
    %p173 = pnand %p171, %p172
    %p174 = pneg %p173
    // Predicated region
    $region9: #{model_with_uncertainty_forward.1} parent=5 // pred_check
      _
    $region10: #{model_with_uncertainty_forward.1} parent=5 // pred_check_branch
      %176 = sbr.rel (%p173) target = $region12
    $region11: #{model_with_uncertainty_forward.1} parent=5 // pred_region
      %s177 = ssub.s32 %s11, 1
      // Predicated region
      $region13: #{model_with_uncertainty_forward.1} parent=11 // pred_check
        %p178 = pneg %p72
      $region14: #{model_with_uncertainty_forward.1} parent=11 // pred_check_branch
        %180 = sbr.rel (%p178) target = $region16
      $region15: #{model_with_uncertainty_forward.1} parent=11 // pred_region
        _
      $region16: #{model_with_uncertainty_forward.1} parent=11 // pred_fallthru
        _
      // Predicated region
      $region17: #{model_with_uncertainty_forward.1} parent=11 // pred_check
        %p181 = pneg %p93
      $region18: #{model_with_uncertainty_forward.1} parent=11 // pred_check_branch
        %183 = sbr.rel (%p181) target = $region20
      $region19: #{model_with_uncertainty_forward.1} parent=11 // pred_region
        _
      $region20: #{model_with_uncertainty_forward.1} parent=11 // pred_fallthru
        _
      // Predicated region
      $region21: #{model_with_uncertainty_forward.1} parent=11 // pred_check
        %p184 = pneg %p114
      $region22: #{model_with_uncertainty_forward.1} parent=11 // pred_check_branch
        %186 = sbr.rel (%p184) target = $region24
      $region23: #{model_with_uncertainty_forward.1} parent=11 // pred_region
        _
      $region24: #{model_with_uncertainty_forward.1} parent=11 // pred_fallthru
        _
      // Predicated region
      $region25: #{model_with_uncertainty_forward.1} parent=11 // pred_check
        %p187 = pneg %p135
      $region26: #{model_with_uncertainty_forward.1} parent=11 // pred_check_branch
        %189 = sbr.rel (%p187) target = $region28
      $region27: #{model_with_uncertainty_forward.1} parent=11 // pred_region
        _
      $region28: #{model_with_uncertainty_forward.1} parent=11 // pred_fallthru
        _
    $region12: #{model_with_uncertainty_forward.1} parent=5 // pred_fallthru
      _
    %p190 = scmp.lt.s32.totalorder %s11, 2
    // Predicated region
    $region29: #{model_with_uncertainty_forward.1} parent=5 // pred_check
      %p191 = pneg %p190
    $region30: #{model_with_uncertainty_forward.1} parent=5 // pred_check_branch
      %193 = sbr.rel (%p191) target = $region32
    $region31: #{model_with_uncertainty_forward.1} parent=5 // pred_region
      // Predicated region
      $region33: #{model_with_uncertainty_forward.1} parent=31 // pred_check
        %p194 = pneg %p45
      $region34: #{model_with_uncertainty_forward.1} parent=31 // pred_check_branch
        %196 = sbr.rel (%p194) target = $region36
      $region35: #{model_with_uncertainty_forward.1} parent=31 // pred_region
        %p197 = scmp.lt.s32.totalorder %s18, 1
        %s198 = scalar_select %p197, %s18, 1
        %p199 = scmp.lt.s32.totalorder %s19, 0
        %s200 = scalar_select %p199, %s19, 0
        %s201 = smul.addr %s200, 3
        %s202 = smul.addr %s198, 3
        %s203 = sadd.s32 %s201, %s202
        %s204 = smul.addr %s203, 2
        %s205 = scalar_lea.vmem %s0, %s204
      $region36: #{model_with_uncertainty_forward.1} parent=31 // pred_fallthru
        _
    $region32: #{model_with_uncertainty_forward.1} parent=5 // pred_fallthru
      _
    %p206 = scmp.le.s32.totalorder 1, %s11
    %p207 = scmp.lt.s32.totalorder %s11, 3
    %p208 = pnand %p206, %p207
    %p209 = pneg %p208
    // Predicated region
    $region37: #{model_with_uncertainty_forward.1} parent=5 // pred_check
      _
    $region38: #{model_with_uncertainty_forward.1} parent=5 // pred_check_branch
      %211 = sbr.rel (%p208) target = $region40
    $region39: #{model_with_uncertainty_forward.1} parent=5 // pred_region
      %s212 = ssub.s32 %s11, 1
      %p213 = scmp.lt.s32.totalorder %s20, 1
      %s214 = scalar_select %p213, %s20, 1
      %p215 = scmp.lt.s32.totalorder %s21, 0
      %s216 = scalar_select %p215, %s21, 0
      %s217 = smul.addr %s216, 3
      %s218 = smul.addr %s214, 3
      %s219 = sadd.s32 %s217, %s218
      %s220 = smul.addr %s219, 2
      %s221 = scalar_lea.vmem %s0, %s220
      %p222 = pneg %p51
      %p223 = pneg %p48
      %p224 = pneg %p72
      %p225 = pneg %p69
      %p226 = pneg %p93
      %p227 = pneg %p90
      %p228 = pneg %p114
      %p229 = pneg %p111
      %p230 = pneg %p135
      %p231 = pneg %p132
      %p232 = pneg %p163
      %p233 = pneg %p160
      %p234 = scmp.lt.s32.totalorder %s20, 1
      %s235 = scalar_select %p234, %s20, 1
      %p236 = scmp.lt.s32.totalorder %s21, 0
      %s237 = scalar_select %p236, %s21, 0
      %s238 = smul.addr %s237, 3
      %s239 = smul.addr %s235, 3
      %s240 = sadd.s32 %s238, %s239
      %s241 = smul.addr %s240, 4
      %s242 = scalar_lea.vmem %s5, %s241
      %p243 = scmp.lt.s32.totalorder %s20, 1
      %s244 = scalar_select %p243, %s20, 1
      %p245 = scmp.lt.s32.totalorder %s21, 0
      %s246 = scalar_select %p245, %s21, 0
      %s247 = smul.addr %s246, 3
      %s248 = smul.addr %s244, 3
      %s249 = sadd.s32 %s247, %s248
      %s250 = smul.addr %s249, 2
      %s251 = scalar_lea.vmem %s0, %s250
      %p252 = scmp.lt.s32.totalorder %s20, 1
      %s253 = scalar_select %p252, %s20, 1
      %p254 = scmp.lt.s32.totalorder %s21, 0
      %s255 = scalar_select %p254, %s21, 0
      %s256 = smul.addr %s255, 3
      %s257 = smul.addr %s253, 3
      %s258 = sadd.s32 %s256, %s257
      %s259 = smul.addr %s258, 4
      %s260 = scalar_lea.vmem %s5, %s259
      %v262 = vld [vmem:[%s251] sm:$0x3f]
      %v264 = vcombine.high %v262, %v262
      %v266 = vunpack.c.l.s4 1983009808
      %v267 = vunpack.c.0.s8 %v266
      %v268 = vlaneseq
      %v269 = vshrl.u32 %v268, 7
      %v270 = vsub.s32 %v267, %v269
      %v271 = vrot.slane %v262, %v270
      %v273 = vunpack.c.l.s4 1983009808
      %v274 = vunpack.c.0.s8 %v273
      %v275 = vlaneseq
      %v276 = vshrl.u32 %v275, 7
      %v277 = vsub.s32 %v274, %v276
      %v278 = vrot.slane %v264, %v277
      %281 = vst [vmem:[#allocation2] sm:$0x33] %v271
      %vm282 = vcmask 254976
      %283 = vst.msk [vmem:[#allocation2 + $0x8] sm:$0x3] %vm282, %v278
      %v284 = vld [vmem:[%s251] sm:$0x3f]
      %v286 = vcombine.low %v284, %v284
      %v288 = vunpack.c.l.s4 1983009808
      %v289 = vunpack.c.0.s8 %v288
      %v290 = vlaneseq
      %v291 = vshrl.u32 %v290, 7
      %v292 = vsub.s32 %v289, %v291
      %v293 = vrot.slane %v286, %v292
      %v295 = vunpack.c.l.s4 1983009808
      %v296 = vunpack.c.0.s8 %v295
      %v297 = vlaneseq
      %v298 = vshrl.u32 %v297, 7
      %v299 = vsub.s32 %v296, %v298
      %v300 = vrot.slane %v284, %v299
      %301 = vrot.lane.b32.xlu0 %v293, 127
      %v302 = vpop.permute.xlu0 %301
      %303 = vrot.lane.b32.xlu0 %v300, 127
      %v304 = vpop.permute.xlu0 %303
      %v305 = vrot.slane %v302, 4
      %v306 = vrot.slane %v304, 4
      %vm307 = vcmask 1043456
      %v308 = vsel %vm307, %v305, %v306
      %vm309 = vcmask 1039360
      %v310 = vsel %vm309, %v302, %v308
      %313 = vst [vmem:[#allocation2] sm:$0xcc] %v310
      %vm314 = vcmask 257026
      %315 = vst.msk [vmem:[#allocation2 + $0x8] sm:$0xc] %vm314, %v304
      %v316 = vld [vmem:[%s251] sm:$0x3f]
      %v318 = vcombine.high %v316, %v316
      %v320 = vunpack.c.l.s4 1983009808
      %v321 = vunpack.c.0.s8 %v320
      %v322 = vlaneseq
      %v323 = vshrl.u32 %v322, 7
      %v324 = vsub.s32 %v321, %v323
      %v325 = vrot.slane %v316, %v324
      %v327 = vunpack.c.l.s4 1983009808
      %v328 = vunpack.c.0.s8 %v327
      %v329 = vlaneseq
      %v330 = vshrl.u32 %v329, 7
      %v331 = vsub.s32 %v328, %v330
      %v332 = vrot.slane %v318, %v331
      %333 = vrot.lane.b32.xlu0 %v325, 126
      %v334 = vpop.permute.xlu0 %333
      %335 = vrot.lane.b32.xlu0 %v332, 126
      %v336 = vpop.permute.xlu0 %335
      %v337 = vrot.slane %v334, 4
      %v338 = vrot.slane %v336, 4
      %v339 = vsel %vm307, %v337, %v338
      %vm340 = vcmask 1031168
      %v341 = vsel %vm340, %v334, %v339
      %344 = vst [vmem:[#allocation2 + $0xc] sm:$0x33] %v341
      %345 = vst.msk [vmem:[#allocation2 + $0x14] sm:$0x3] %vm282, %v336
      %v346 = vld [vmem:[%s251] sm:$0x3f]
      %v348 = vcombine.low %v346, %v346
      %v350 = vunpack.c.l.s4 1983009808
      %v351 = vunpack.c.0.s8 %v350
      %v352 = vlaneseq
      %v353 = vshrl.u32 %v352, 7
      %v354 = vsub.s32 %v351, %v353
      %v355 = vrot.slane %v348, %v354
      %v357 = vunpack.c.l.s4 1983009808
      %v358 = vunpack.c.0.s8 %v357
      %v359 = vlaneseq
      %v360 = vshrl.u32 %v359, 7
      %v361 = vsub.s32 %v358, %v360
      %v362 = vrot.slane %v346, %v361
      %363 = vrot.lane.b32.xlu0 %v355, 110
      %v364 = vpop.permute.xlu0 %363
      %365 = vrot.lane.b32.xlu0 %v362, 110
      %v366 = vpop.permute.xlu0 %365
      %v367 = vrot.slane %v364, 4
      %v368 = vrot.slane %v366, 4
      %v369 = vsel %vm307, %v367, %v368
      %vm370 = vcmask 900096
      %v371 = vsel %vm370, %v364, %v369
      %374 = vst [vmem:[#allocation2 + $0xc] sm:$0xcc] %v371
      %375 = vst.msk [vmem:[#allocation2 + $0x14] sm:$0xc] %vm314, %v366
      %v376 = vld [vmem:[%s251] sm:$0x3f]
      %v378 = vcombine.high %v376, %v376
      %v380 = vunpack.c.l.s4 1983009808
      %v381 = vunpack.c.0.s8 %v380
      %v382 = vlaneseq
      %v383 = vshrl.u32 %v382, 7
      %v384 = vsub.s32 %v381, %v383
      %v385 = vrot.slane %v376, %v384
      %v387 = vunpack.c.l.s4 1983009808
      %v388 = vunpack.c.0.s8 %v387
      %v389 = vlaneseq
      %v390 = vshrl.u32 %v389, 7
      %v391 = vsub.s32 %v388, %v390
      %v392 = vrot.slane %v378, %v391
      %393 = vrot.lane.b32.xlu0 %v385, 109
      %v394 = vpop.permute.xlu0 %393
      %395 = vrot.lane.b32.xlu0 %v392, 109
      %v396 = vpop.permute.xlu0 %395
      %v397 = vrot.slane %v394, 4
      %v398 = vrot.slane %v396, 4
      %v399 = vsel %vm307, %v397, %v398
      %vm400 = vcmask 891904
      %v401 = vsel %vm400, %v394, %v399
      %404 = vst [vmem:[#allocation2 + $0x18] sm:$0x33] %v401
      %405 = vst.msk [vmem:[#allocation2 + $0x20] sm:$0x3] %vm282, %v396
      %v406 = vld [vmem:[%s251] sm:$0x3f]
      %v408 = vcombine.low %v406, %v406
      %v410 = vunpack.c.l.s4 1983009808
      %v411 = vunpack.c.0.s8 %v410
      %v412 = vlaneseq
      %v413 = vshrl.u32 %v412, 7
      %v414 = vsub.s32 %v411, %v413
      %v415 = vrot.slane %v408, %v414
      %v417 = vunpack.c.l.s4 1983009808
      %v418 = vunpack.c.0.s8 %v417
      %v419 = vlaneseq
      %v420 = vshrl.u32 %v419, 7
      %v421 = vsub.s32 %v418, %v420
      %v422 = vrot.slane %v406, %v421
      %423 = vrot.lane.b32.xlu0 %v415, 108
      %v424 = vpop.permute.xlu0 %423
      %425 = vrot.lane.b32.xlu0 %v422, 108
      %v426 = vpop.permute.xlu0 %425
      %v427 = vrot.slane %v424, 4
      %v428 = vrot.slane %v426, 4
      %v429 = vsel %vm307, %v427, %v428
      %vm430 = vcmask 883712
      %v431 = vsel %vm430, %v424, %v429
      %434 = vst [vmem:[#allocation2 + $0x18] sm:$0xcc] %v431
      %435 = vst.msk [vmem:[#allocation2 + $0x20] sm:$0xc] %vm314, %v426
      %v436 = vld [vmem:[%s251] sm:$0x3f]
      %v438 = vcombine.high %v436, %v436
      %v440 = vunpack.c.l.s4 1983009808
      %v441 = vunpack.c.0.s8 %v440
      %v442 = vlaneseq
      %v443 = vshrl.u32 %v442, 7
      %v444 = vsub.s32 %v441, %v443
      %v445 = vrot.slane %v436, %v444
      %v447 = vunpack.c.l.s4 1983009808
      %v448 = vunpack.c.0.s8 %v447
      %v449 = vlaneseq
      %v450 = vshrl.u32 %v449, 7
      %v451 = vsub.s32 %v448, %v450
      %v452 = vrot.slane %v438, %v451
      %453 = vrot.lane.b32.xlu0 %v445, 92
      %v454 = vpop.permute.xlu0 %453
      %455 = vrot.lane.b32.xlu0 %v452, 92
      %v456 = vpop.permute.xlu0 %455
      %v457 = vrot.slane %v454, 4
      %v458 = vrot.slane %v456, 4
      %v459 = vsel %vm307, %v457, %v458
      %vm460 = vcmask 752640
      %v461 = vsel %vm460, %v454, %v459
      %464 = vst [vmem:[#allocation2 + $0x24] sm:$0x33] %v461
      %465 = vst.msk [vmem:[#allocation2 + $0x2c] sm:$0x3] %vm282, %v456
      %v466 = vld [vmem:[%s251] sm:$0x3f]
      %v468 = vcombine.low %v466, %v466
      %v470 = vunpack.c.l.s4 1983009808
      %v471 = vunpack.c.0.s8 %v470
      %v472 = vlaneseq
      %v473 = vshrl.u32 %v472, 7
      %v474 = vsub.s32 %v471, %v473
      %v475 = vrot.slane %v468, %v474
      %v477 = vunpack.c.l.s4 1983009808
      %v478 = vunpack.c.0.s8 %v477
      %v479 = vlaneseq
      %v480 = vshrl.u32 %v479, 7
      %v481 = vsub.s32 %v478, %v480
      %v482 = vrot.slane %v466, %v481
      %483 = vrot.lane.b32.xlu0 %v475, 91
      %v484 = vpop.permute.xlu0 %483
      %485 = vrot.lane.b32.xlu0 %v482, 91
      %v486 = vpop.permute.xlu0 %485
      %v487 = vrot.slane %v484, 4
      %v488 = vrot.slane %v486, 4
      %v489 = vsel %vm307, %v487, %v488
      %vm490 = vcmask 744448
      %v491 = vsel %vm490, %v484, %v489
      %494 = vst [vmem:[#allocation2 + $0x24] sm:$0xcc] %v491
      %495 = vst.msk [vmem:[#allocation2 + $0x2c] sm:$0xc] %vm314, %v486
      %v496 = vld [vmem:[%s251] sm:$0x3f]
      %v498 = vcombine.high %v496, %v496
      %v500 = vunpack.c.l.s4 1983009808
      %v501 = vunpack.c.0.s8 %v500
      %v502 = vlaneseq
      %v503 = vshrl.u32 %v502, 7
      %v504 = vsub.s32 %v501, %v503
      %v505 = vrot.slane %v496, %v504
      %v507 = vunpack.c.l.s4 1983009808
      %v508 = vunpack.c.0.s8 %v507
      %v509 = vlaneseq
      %v510 = vshrl.u32 %v509, 7
      %v511 = vsub.s32 %v508, %v510
      %v512 = vrot.slane %v498, %v511
      %513 = vrot.lane.b32.xlu0 %v505, 90
      %v514 = vpop.permute.xlu0 %513
      %515 = vrot.lane.b32.xlu0 %v512, 90
      %v516 = vpop.permute.xlu0 %515
      %v517 = vrot.slane %v514, 4
      %v518 = vrot.slane %v516, 4
      %v519 = vsel %vm307, %v517, %v518
      %vm520 = vcmask 736256
      %v521 = vsel %vm520, %v514, %v519
      %524 = vst [vmem:[#allocation2 + $0x30] sm:$0x33] %v521
      %525 = vst.msk [vmem:[#allocation2 + $0x38] sm:$0x3] %vm282, %v516
      %v526 = vld [vmem:[%s1] sm:$0xf]
      %v527 = vld [vmem:[%s1 + $0x4] sm:$0xf]
      %v528 = vld [vmem:[%s1 + $0x8] sm:$0xf]
      %v529 = vld [vmem:[%s1 + $0xc] sm:$0xf]
      %v530 = vld [vmem:[#allocation2] sm:$0xff]
      %v531 = vld [vmem:[#allocation2 + $0x8] sm:$0xf]
      %v532 = vld [vmem:[#allocation2 + $0xc] sm:$0xff]
      %v533 = vld [vmem:[#allocation2 + $0x14] sm:$0xf]
      %v534 = vld [vmem:[#allocation2 + $0x18] sm:$0xff]
      %v535 = vld [vmem:[#allocation2 + $0x20] sm:$0xf]
      %v536 = vld [vmem:[#allocation2 + $0x24] sm:$0xff]
      %v537 = vld [vmem:[#allocation2 + $0x2c] sm:$0xf]
      %v538 = vld [vmem:[#allocation2 + $0x30] sm:$0x33]
      %v539 = vld [vmem:[#allocation2 + $0x38] sm:$0x3]
      %v540 = vld [vmem:[%s2] sm:$0xff]
      %v541 = vld [vmem:[%s2 + $0x8] sm:$0xff]
      %v542 = vld [vmem:[%s2 + $0x10] sm:$0xff]
      %v543 = vld [vmem:[%s2 + $0x18] sm:$0xff]
      %545 = vset.pattern.permute.xlu0 0
      %546 = vperm.xlu0 %545, %v540
      %v547 = vpop.permute.xlu0 %546
      %550 = vset.pattern.permute.xlu0 0
      %551 = vperm.xlu0 %550, %v541
      %v552 = vpop.permute.xlu0 %551
      %555 = vset.pattern.permute.xlu0 0
      %556 = vperm.xlu0 %555, %v542
      %v557 = vpop.permute.xlu0 %556
      %560 = vset.pattern.permute.xlu0 0
      %561 = vperm.xlu0 %560, %v543
      %v562 = vpop.permute.xlu0 %561
      %v568 = vunpack.c.l.b16 %v526
      %v569 = vunpack.c.l.b16 %v527
      %v570 = vunpack.c.l.b16 %v528
      %v571 = vunpack.c.l.b16 %v529
      %v572 = vpack.c.b16 %v569, %v568
      %v573 = vpack.c.b16 %v571, %v570
      %v584 = vunpack.c.l.b16 %v530
      %v585 = vunpack.c.h.b16 %v530
      %v586 = vunpack.c.l.b16 %v531
      %v587 = vunpack.c.l.b16 %v532
      %v588 = vunpack.c.h.b16 %v532
      %v589 = vunpack.c.l.b16 %v533
      %v590 = vunpack.c.l.b16 %v534
      %v591 = vunpack.c.h.b16 %v534
      %v592 = vunpack.c.l.b16 %v535
      %v593 = vunpack.c.l.b16 %v536
      %v594 = vunpack.c.h.b16 %v536
      %v595 = vunpack.c.l.b16 %v537
      %v596 = vunpack.c.l.b16 %v538
      %v597 = vunpack.c.h.b16 %v538
      %v598 = vunpack.c.l.b16 %v539
      %v599 = vpack.c.b16 %v587, %v584
      %v600 = vpack.c.b16 %v588, %v585
      %v601 = vpack.c.b16 %v589, %v586
      %v602 = vpack.c.b16 %v593, %v590
      %v603 = vpack.c.b16 %v594, %v591
      %v604 = vpack.c.b16 %v595, %v592
      %v605 = vpack.c.b16 %v596, %v596
      %v606 = vpack.c.b16 %v597, %v597
      %v607 = vpack.c.b16 %v598, %v598
      %vm614 = vcmask 293888
      %v616 = vsel %vm614, %v572, 0
      %v619 = vsel %vm614, %v573, 0
      %vm621 = vcmask 1041408
      %v623 = vsel %vm621, %v605, 0
      %v626 = vsel %vm621, %v606, 0
      %v629 = vsel %vm621, %v607, 0
      %631 = vmatprep.subr.bf16.mxu0 0
      %632 = vmatpush1.bf16.msra.mxu0 0
      %633 = vmatprep.subr.bf16.mxu0 0
      %634 = vmatpush1.bf16.msra.mxu0 0
      %635 = vmatprep.subr.bf16.mxu0 0
      %636 = vmatpush1.bf16.msra.mxu0 0
      %637 = vmatprep.subr.bf16.mxu0 0
      %638 = vmatpush1.bf16.msra.mxu0 0
      %639 = vmatprep.subr.bf16.mxu0 0
      %640 = vmatpush1.bf16.msra.mxu0 0
      %641 = vmatprep.subr.bf16.mxu0 %v626
      %642 = vmatpush1.bf16.msra.mxu0 %v623
      %643 = vmatprep.subr.bf16.mxu0 %v603
      %644 = vmatpush1.bf16.msra.mxu0 %v602
      %645 = vmatprep.subr.bf16.mxu0 %v600
      %646 = vmatpush1.bf16.msra.mxu0 %v599
      %647 = vmatprep.subr.bf16.mxu0 0
      %648 = vmatpush2.bf16.msra.mxu0 0
      %649 = vmatprep.subr.bf16.mxu0 0
      %650 = vmatpush2.bf16.msra.mxu0 0
      %651 = vmatprep.subr.bf16.mxu0 0
      %652 = vmatpush2.bf16.msra.mxu0 0
      %653 = vmatprep.subr.bf16.mxu0 0
      %654 = vmatpush2.bf16.msra.mxu0 0
      %655 = vmatprep.subr.bf16.mxu0 0
      %656 = vmatpush2.bf16.msra.mxu0 0
      %657 = vmatprep.subr.bf16.mxu0 0
      %658 = vmatpush2.bf16.msra.mxu0 0
      %659 = vmatprep.subr.bf16.mxu0 0
      %660 = vmatpush2.bf16.msra.mxu0 0
      %661 = vmatprep.subr.bf16.mxu0 0
      %662 = vmatpush2.bf16.msra.mxu0 0
      %663 = vmatprep.mubr.bf16.mxu0 0
      %664 = vmatmul.mubr.bf16.gmra.mxu0 %v616
      %v665 = vpop.f32.mrf.mxu0
      %v666 = vadd.f32 %v547, %v665
      %v667 = vpop.f32.mrf.mxu0
      %v668 = vadd.f32 %v547, %v667
      %v669 = vpop.f32.mrf.mxu0
      %v670 = vadd.f32 %v552, %v669
      %v671 = vpop.f32.mrf.mxu0
      %v672 = vadd.f32 %v552, %v671
      %673 = vmatprep.mubr.bf16.mxu0 0
      %674 = vmatmul.mubr.bf16.gmra.mxu0 %v619
      %v675 = vpop.f32.mrf.mxu0
      %v676 = vadd.f32 %v557, %v675
      %v677 = vpop.f32.mrf.mxu0
      %v678 = vadd.f32 %v557, %v677
      %v679 = vpop.f32.mrf.mxu0
      %v680 = vadd.f32 %v562, %v679
      %v681 = vpop.f32.mrf.mxu0
      %v682 = vadd.f32 %v562, %v681
      %683 = vdwg.mxu0
      %684 = vmatprep.subr.bf16.mxu0 0
      %685 = vmatpush1.bf16.msra.mxu0 0
      %686 = vmatprep.subr.bf16.mxu0 0
      %687 = vmatpush1.bf16.msra.mxu0 0
      %688 = vmatprep.subr.bf16.mxu0 0
      %689 = vmatpush1.bf16.msra.mxu0 0
      %690 = vmatprep.subr.bf16.mxu0 0
      %691 = vmatpush1.bf16.msra.mxu0 0
      %692 = vmatprep.subr.bf16.mxu0 0
      %693 = vmatpush1.bf16.msra.mxu0 0
      %694 = vmatprep.subr.bf16.mxu0 0
      %695 = vmatpush1.bf16.msra.mxu0 %v629
      %696 = vmatprep.subr.bf16.mxu0 0
      %697 = vmatpush1.bf16.msra.mxu0 %v604
      %698 = vmatprep.subr.bf16.mxu0 0
      %699 = vmatpush1.bf16.msra.mxu0 %v601
      %700 = vmatprep.subr.bf16.mxu0 0
      %701 = vmatpush2.bf16.msra.mxu0 0
      %702 = vmatprep.subr.bf16.mxu0 0
      %703 = vmatpush2.bf16.msra.mxu0 0
      %704 = vmatprep.subr.bf16.mxu0 0
      %705 = vmatpush2.bf16.msra.mxu0 0
      %706 = vmatprep.subr.bf16.mxu0 0
      %707 = vmatpush2.bf16.msra.mxu0 0
      %708 = vmatprep.subr.bf16.mxu0 0
      %709 = vmatpush2.bf16.msra.mxu0 0
      %710 = vmatprep.subr.bf16.mxu0 0
      %711 = vmatpush2.bf16.msra.mxu0 0
      %712 = vmatprep.subr.bf16.mxu0 0
      %713 = vmatpush2.bf16.msra.mxu0 0
      %714 = vmatprep.subr.bf16.mxu0 0
      %715 = vmatpush2.bf16.msra.mxu0 0
      %716 = vmatprep.mubr.bf16.mxu0 0
      %717 = vmatmul.mubr.bf16.gmra.mxu0 %v616
      %v718 = vpop.f32.mrf.mxu0
      %v719 = vadd.f32 %v547, %v718
      %v720 = vpop.f32.mrf.mxu0
      %v721 = vpop.f32.mrf.mxu0
      %v722 = vadd.f32 %v552, %v721
      %v723 = vpop.f32.mrf.mxu0
      %724 = vmatprep.mubr.bf16.mxu0 0
      %725 = vmatmul.mubr.bf16.gmra.mxu0 %v619
      %v726 = vpop.f32.mrf.mxu0
      %v727 = vadd.f32 %v557, %v726
      %v728 = vpop.f32.mrf.mxu0
      %v729 = vpop.f32.mrf.mxu0
      %v730 = vadd.f32 %v562, %v729
      %v731 = vpop.f32.mrf.mxu0
      %732 = vdwg.mxu0
      %v733 = vmax.f32 %v666, 0.0
      %v734 = vmax.f32 %v668, 0.0
      %v735 = vmax.f32 %v719, 0.0
      %v736 = vmax.f32 %v670, 0.0
      %v737 = vmax.f32 %v672, 0.0
      %v738 = vmax.f32 %v722, 0.0
      %v739 = vmax.f32 %v676, 0.0
      %v740 = vmax.f32 %v678, 0.0
      %v741 = vmax.f32 %v727, 0.0
      %v742 = vmax.f32 %v680, 0.0
      %v743 = vmax.f32 %v682, 0.0
      %v744 = vmax.f32 %v730, 0.0
      %v745 = vld [vmem:[%s3] sm:$0x3]
      %v746 = vpack.c.bf16 %v736, %v733
      %v747 = vpack.c.bf16 %v737, %v734
      %v748 = vpack.c.bf16 %v738, %v735
      %v749 = vpack.c.bf16 %v742, %v739
      %v750 = vpack.c.bf16 %v743, %v740
      %v751 = vpack.c.bf16 %v744, %v741
      %v752 = vld [vmem:[%s4] sm:$0x7]
      %754 = vset.pattern.permute.xlu0 0
      %755 = vperm.xlu0 %754, %v752
      %v756 = vpop.permute.xlu0 %755
      %vm758 = vcmask 261120
      %v760 = vsel %vm758, %v745, 0
      %762 = vmatprep.subr.bf16.mxu0 0
      %763 = vmatpush1.bf16.msra.mxu0 0
      %764 = vmatprep.subr.bf16.mxu0 0
      %765 = vmatpush1.bf16.msra.mxu0 0
      %766 = vmatprep.subr.bf16.mxu0 0
      %767 = vmatpush1.bf16.msra.mxu0 0
      %768 = vmatprep.subr.bf16.mxu0 0
      %769 = vmatpush1.bf16.msra.mxu0 0
      %770 = vmatprep.subr.bf16.mxu0 0
      %771 = vmatpush1.bf16.msra.mxu0 0
      %772 = vmatprep.subr.bf16.mxu0 0
      %773 = vmatpush1.bf16.msra.mxu0 0
      %774 = vmatprep.subr.bf16.mxu0 %v750
      %775 = vmatpush1.bf16.msra.mxu0 %v749
      %776 = vmatprep.subr.bf16.mxu0 %v747
      %777 = vmatpush1.bf16.msra.mxu0 %v746
      %778 = vmatprep.subr.bf16.mxu0 0
      %779 = vmatpush2.bf16.msra.mxu0 0
      %780 = vmatprep.subr.bf16.mxu0 0
      %781 = vmatpush2.bf16.msra.mxu0 0
      %782 = vmatprep.subr.bf16.mxu0 0
      %783 = vmatpush2.bf16.msra.mxu0 0
      %784 = vmatprep.subr.bf16.mxu0 0
      %785 = vmatpush2.bf16.msra.mxu0 0
      %786 = vmatprep.subr.bf16.mxu0 0
      %787 = vmatpush2.bf16.msra.mxu0 0
      %788 = vmatprep.subr.bf16.mxu0 0
      %789 = vmatpush2.bf16.msra.mxu0 0
      %790 = vmatprep.subr.bf16.mxu0 0
      %791 = vmatpush2.bf16.msra.mxu0 0
      %792 = vmatprep.subr.bf16.mxu0 0
      %793 = vmatpush2.bf16.msra.mxu0 0
      %794 = vmatprep.mubr.bf16.mxu0 0
      %795 = vmatmul.mubr.bf16.gmra.mxu0 %v760
      %v796 = vpop.f32.mrf.mxu0
      %v797 = vadd.f32 %v756, %v796
      %v798 = vpop.f32.mrf.mxu0
      %v799 = vadd.f32 %v756, %v798
      %v800 = vpop.f32.mrf.mxu0
      %v801 = vpop.f32.mrf.mxu0
      %802 = vdwg.mxu0
      %803 = vmatprep.subr.bf16.mxu0 0
      %804 = vmatpush1.bf16.msra.mxu0 0
      %805 = vmatprep.subr.bf16.mxu0 0
      %806 = vmatpush1.bf16.msra.mxu0 0
      %807 = vmatprep.subr.bf16.mxu0 0
      %808 = vmatpush1.bf16.msra.mxu0 0
      %809 = vmatprep.subr.bf16.mxu0 0
      %810 = vmatpush1.bf16.msra.mxu0 0
      %811 = vmatprep.subr.bf16.mxu0 0
      %812 = vmatpush1.bf16.msra.mxu0 0
      %813 = vmatprep.subr.bf16.mxu0 0
      %814 = vmatpush1.bf16.msra.mxu0 0
      %815 = vmatprep.subr.bf16.mxu0 0
      %816 = vmatpush1.bf16.msra.mxu0 %v751
      %817 = vmatprep.subr.bf16.mxu0 0
      %818 = vmatpush1.bf16.msra.mxu0 %v748
      %819 = vmatprep.subr.bf16.mxu0 0
      %820 = vmatpush2.bf16.msra.mxu0 0
      %821 = vmatprep.subr.bf16.mxu0 0
      %822 = vmatpush2.bf16.msra.mxu0 0
      %823 = vmatprep.subr.bf16.mxu0 0
      %824 = vmatpush2.bf16.msra.mxu0 0
      %825 = vmatprep.subr.bf16.mxu0 0
      %826 = vmatpush2.bf16.msra.mxu0 0
      %827 = vmatprep.subr.bf16.mxu0 0
      %828 = vmatpush2.bf16.msra.mxu0 0
      %829 = vmatprep.subr.bf16.mxu0 0
      %830 = vmatpush2.bf16.msra.mxu0 0
      %831 = vmatprep.subr.bf16.mxu0 0
      %832 = vmatpush2.bf16.msra.mxu0 0
      %833 = vmatprep.subr.bf16.mxu0 0
      %834 = vmatpush2.bf16.msra.mxu0 0
      %835 = vmatprep.mubr.bf16.mxu0 0
      %836 = vmatmul.mubr.bf16.gmra.mxu0 %v760
      %v837 = vpop.f32.mrf.mxu0
      %v838 = vadd.f32 %v756, %v837
      %v839 = vpop.f32.mrf.mxu0
      %v840 = vpop.f32.mrf.mxu0
      %v841 = vpop.f32.mrf.mxu0
      %842 = vdwg.mxu0
      %v845 = vcombine.low %v797, %v799
      %847 = vst [vmem:[%s260] sm:$0x77] %v845
      %vm848 = vcmask 256000
      %849 = vst.msk [vmem:[%s260 + $0x8] sm:$0x7] %vm848, %v838
      %p850 = scmp.lt.s32.totalorder %s20, 1
      %s851 = scalar_select %p850, %s20, 1
      %p852 = scmp.lt.s32.totalorder %s21, 0
      %s853 = scalar_select %p852, %s21, 0
      %s854 = smul.addr %s853, 3
      %s855 = smul.addr %s851, 3
      %s856 = sadd.s32 %s854, %s855
      %s857 = smul.addr %s856, 4
      %s858 = scalar_lea.vmem %s5, %s857
      // Predicated region
      $region41: #{model_with_uncertainty_forward.1} parent=39 // pred_check
        %p859 = pneg %p160
      $region42: #{model_with_uncertainty_forward.1} parent=39 // pred_check_branch
        %861 = sbr.rel (%p859) target = $region44
      $region43: #{model_with_uncertainty_forward.1} parent=39 // pred_region
        _
      $region44: #{model_with_uncertainty_forward.1} parent=39 // pred_fallthru
        _
    $region40: #{model_with_uncertainty_forward.1} parent=5 // pred_fallthru
      _
    %p862 = scmp.le.s32.totalorder 2, %s11
    // Predicated region
    $region45: #{model_with_uncertainty_forward.1} parent=5 // pred_check
      %p863 = pneg %p862
    $region46: #{model_with_uncertainty_forward.1} parent=5 // pred_check_branch
      %865 = sbr.rel (%p863) target = $region48
    $region47: #{model_with_uncertainty_forward.1} parent=5 // pred_region
      %s866 = ssub.s32 %s11, 2
      // Predicated region
      $region49: #{model_with_uncertainty_forward.1} parent=47 // pred_check
        %p867 = pneg %p166
      $region50: #{model_with_uncertainty_forward.1} parent=47 // pred_check_branch
        %869 = sbr.rel (%p867) target = $region52
      $region51: #{model_with_uncertainty_forward.1} parent=47 // pred_region
        %p870 = scmp.lt.s32.totalorder %s22, 1
        %s871 = scalar_select %p870, %s22, 1
        %p872 = scmp.lt.s32.totalorder %s23, 0
        %s873 = scalar_select %p872, %s23, 0
        %s874 = smul.addr %s873, 3
        %s875 = smul.addr %s871, 3
        %s876 = sadd.s32 %s874, %s875
        %s877 = smul.addr %s876, 4
        %s878 = scalar_lea.vmem %s5, %s877
      $region52: #{model_with_uncertainty_forward.1} parent=47 // pred_fallthru
        _
    $region48: #{model_with_uncertainty_forward.1} parent=5 // pred_fallthru
      _
  $region6: #{model_with_uncertainty_forward.1} parent=0 // loop_footer
    %s15 = sadd.s32 1, %s11
  $region7: #{model_with_uncertainty_forward.1} parent=0 // loop_footer_branch
    %10 = sbr.rel target = $region3
  $region8: #{model_with_uncertainty_forward.1} parent=0 // loop_exit
    _

</llo_original>
